<compile_context>
chip_gen: v6e
topology: v6e:2x2x1
jax: 0.10.0
libtpu: 0.0.40
codegen_flags: <defaults>
</compile_context>

<pallas_src>
import functools

import jax
import jax.numpy as jnp
from jax import lax
from jax.experimental import pallas as pl
from jax.experimental.pallas import tpu as pltpu


def _round_up(v, m):
    return (v + m - 1) // m * m


def _vmem_budget_bytes():
    """~3/4 of physical VMEM; conservative 48 MiB fallback (v7x has 64 MiB/TC)."""
    try:
        cap = pltpu.get_tpu_info().vmem_capacity_bytes
    except Exception:
        cap = 64 * 1024 * 1024
    return int(cap * 3 // 4)


def _pick_tiles(B, In_p, Out_p, x_bytes, w_bytes, out_bytes, budget):
    """B-aware, VMEM-budget-aware tile selection.

    Prefers (a) >= 2 Out tiles so the parallel axis can shard across TCs (v7x),
    then (b) the largest weight tile that fits the double-buffered footprint.
    """
    def footprint(tn, tk):
        return (2 * tn * tk * w_bytes        # weight double-buffer
                + 2 * B * tk * x_bytes       # x double-buffer
                + B * tn * 4                 # f32 accumulator scratch
                + 2 * B * tn * out_bytes     # output double-buffer
                + 3 * 2 * 8 * tn * 4)        # bias/gamma/beta (1,tn) blocks

    best, best_key = None, None
    for tn in (2048, 1024, 512, 256, 128):
        if Out_p % tn:
            continue
        for tk in (2048, 1024, 512, 256, 128):
            if In_p % tk:
                continue
            if footprint(tn, tk) > budget:
                continue
            key = (Out_p // tn >= 2, tn * tk, tk, tn)
            if best_key is None or key > best_key:
                best_key, best = key, (tn, tk)
    if best is None:
        best = (128, 128)  # minimal lane-dense tiles; compiler pipelines anyway
    return best


def _fc_kernel(x_ref, w_ref, b_ref, g_ref, beta_ref, o_ref, acc_ref, *,
               is_bn: bool, act_name: str, eps: float):
    k = pl.program_id(1)

    # x_ref: [B, tk]; w_ref: [tk, tn] (weight stored pre-transposed [In, Out]).
    # Native dtype into the MXU, f32 accumulation.
    partial = jnp.dot(x_ref[...], w_ref[...], preferred_element_type=jnp.float32)

    @pl.when(k == 0)
    def _init():
        acc_ref[...] = partial

    @pl.when(k != 0)
    def _accum():
        acc_ref[...] += partial

    @pl.when(k == pl.num_programs(1) - 1)
    def _finalize():
        y = acc_ref[...]                                  # [B, tn] f32
        if is_bn:
            # BatchNorm1d, training mode: batch mean / biased variance.
            # Full batch lives in this block, so stats are exact; two-pass
            # centered variance avoids E[y^2]-mean^2 cancellation.
            mean = jnp.mean(y, axis=0, keepdims=True)     # [1, tn]
            c = y - mean
            var = jnp.mean(c * c, axis=0, keepdims=True)
            y = c * lax.rsqrt(var + eps)
            y = (y * g_ref[...].astype(jnp.float32)
                 + beta_ref[...].astype(jnp.float32))
        else:
            y = y + b_ref[...].astype(jnp.float32)

        if act_name == "leaky":
            y = jnp.where(y >= 0.0, y, 0.2 * y)           # nn.LeakyReLU(0.2)
        elif act_name == "relu":
            y = jnp.maximum(y, 0.0)
        elif act_name == "tanh":
            y = jnp.tanh(y)
        elif act_name == "sigmoid":
            y = jax.nn.sigmoid(y)                         # EUP exp path
        else:
            raise ValueError(f"unknown activation {act_name}")

        o_ref[...] = y.astype(o_ref.dtype)


def prepare_fc_params(weight, bias, gamma, beta):
    """One-time parameter conversion (hoisted out of the per-call path).

    weight: [Out, In] (PyTorch layout) -> padded, pre-transposed [In_p, Out_p];
    bias/gamma/beta: [Out] -> padded [1, Out_p].
    """
    Out, In = weight.shape
    In_p = _round_up(In, 128)
    Out_p = _round_up(Out, 128)
    pad_o = (0, Out_p - Out)
    return {
        "w_t": jnp.pad(weight.T, ((0, In_p - In), pad_o)),
        "bias": jnp.pad(bias, pad_o).reshape(1, Out_p),
        "gamma": jnp.pad(gamma, pad_o).reshape(1, Out_p),
        "beta": jnp.pad(beta, pad_o).reshape(1, Out_p),
        "in_features": In,
        "out_features": Out,
    }


def fc_forward(x, params, *, is_bn, act_name, eps=1e-5):
    """x: [B, In]; params from prepare_fc_params()."""
    B, In = x.shape
    assert In == params["in_features"]
    Out = params["out_features"]
    w_t = params["w_t"]
    In_p, Out_p = w_t.shape

    # Per-call padding of x only (cheap); zero K-padding is exact for the matmul.
    if In_p != In:
        x = jnp.pad(x, ((0, 0), (0, In_p - In)))

    budget = _vmem_budget_bytes()
    tn, tk = _pick_tiles(B, In_p, Out_p,
                         x.dtype.itemsize, w_t.dtype.itemsize, x.dtype.itemsize,
                         budget)
    grid = (Out_p // tn, In_p // tk)

    kernel = functools.partial(
        _fc_kernel, is_bn=is_bn, act_name=act_name.lower(), eps=eps)

    out_p = pl.pallas_call(
        kernel,
        out_shape=jax.ShapeDtypeStruct((B, Out_p), x.dtype),
        grid_spec=pltpu.PrefetchScalarGridSpec(
            num_scalar_prefetch=0,
            grid=grid,
            in_specs=[
                pl.BlockSpec((B, tk), lambda j, k: (0, k)),    # x
                pl.BlockSpec((tk, tn), lambda j, k: (k, j)),   # weight.T [In, Out]
                pl.BlockSpec((1, tn), lambda j, k: (0, j)),    # bias
                pl.BlockSpec((1, tn), lambda j, k: (0, j)),    # gamma
                pl.BlockSpec((1, tn), lambda j, k: (0, j)),    # beta
            ],
            out_specs=pl.BlockSpec((B, tn), lambda j, k: (0, j)),
            scratch_shapes=[pltpu.VMEM((B, tn), jnp.float32)],
        ),
        compiler_params=pltpu.CompilerParams(
            dimension_semantics=("parallel", "arbitrary"),
            vmem_limit_bytes=budget,
        ),
    )(x, w_t, params["bias"], params["gamma"], params["beta"])

    return out_p[:, :Out] if Out_p != Out else out_p


def _reference(x, weight, bias, gamma, beta, *, is_bn, act_name, eps=1e-5):
    y = x.astype(jnp.float32) @ weight.astype(jnp.float32).T
    if is_bn:
        mean = jnp.mean(y, axis=0, keepdims=True)
        var = jnp.mean((y - mean) ** 2, axis=0, keepdims=True)
        y = (y - mean) / jnp.sqrt(var + eps)
        y = y * gamma + beta
    else:
        y = y + bias
    a = act_name.lower()
    if a == "leaky":
        y = jnp.where(y >= 0, y, 0.2 * y)
    elif a == "relu":
        y = jnp.maximum(y, 0.0)
    elif a == "tanh":
        y = jnp.tanh(y)
    else:
        y = jax.nn.sigmoid(y)
    return y


def _make_params(key, in_f, out_f):
    kw, kb, kg, kbe = jax.random.split(key, 4)
    bound = 1.0 / (in_f ** 0.5)
    weight = jax.random.uniform(kw, (out_f, in_f), minval=-bound, maxval=bound,
                                dtype=jnp.float32)
    bias = jax.random.uniform(kb, (out_f,), minval=-bound, maxval=bound,
                              dtype=jnp.float32)
    gamma = 1.0 + 0.1 * jax.random.normal(kg, (out_f,), dtype=jnp.float32)
    beta = 0.1 * jax.random.normal(kbe, (out_f,), dtype=jnp.float32)
    return weight, bias, gamma, beta


def _run_case(key_x, key_p, B, IN_F, OUT_F, combos):
    x = jax.random.normal(key_x, (B, IN_F), dtype=jnp.float32)
    weight, bias, gamma, beta = _make_params(key_p, IN_F, OUT_F)
    for is_bn, act in combos:
        b_used = bias * 0.0 if is_bn else bias        # nn.Linear(bias=not is_bn)
        params = prepare_fc_params(weight, b_used, gamma, beta)  # one-time prep
        out = fc_forward(x, params, is_bn=is_bn, act_name=act)
        out = jax.block_until_ready(out)
        ref = _reference(x, weight, b_used, gamma, beta, is_bn=is_bn, act_name=act)
        assert out.shape == (B, OUT_F)
        assert jnp.allclose(out, ref, atol=1e-4, rtol=1e-4), (B, IN_F, OUT_F, is_bn, act)


if __name__ == "__main__":
    key = jax.random.PRNGKey(0)
    k1, k2, k3, k4, k5, k6 = jax.random.split(key, 6)

    # Case A: tiny unaligned shapes (exercises 128-padding + single-tile grid).
    _run_case(k1, k2, B=8, IN_F=32, OUT_F=64,
              combos=[(True, "leaky"), (False, "relu"),
                      (True, "tanh"), (False, "sigmoid")])

    # Case B: multi-tile (Out, K) grid -> K-accumulation, parallel Out axis,
    # exact BN across output tiles.
    _run_case(k3, k4, B=16, IN_F=384, OUT_F=384,
              combos=[(True, "leaky"), (False, "relu")])

    # Case C: shape where the picker takes >=2 Out tiles (Out_p=512 -> tn=256)
    # with a single K step (assign-on-k==0 path).
    _run_case(k5, k6, B=8, IN_F=256, OUT_F=512,
              combos=[(True, "sigmoid")])

    print("KERNEL_OK")
</pallas_src>

<mosaic_0001>
module attributes {stable_mosaic.version = 11 : i64} {
  func.func @_fc_kernel(%arg0: i32, %arg1: i32, %arg2: memref<8x128xf32, #tpu.memory_space<vmem>>, %arg3: memref<128x128xf32, #tpu.memory_space<vmem>>, %arg4: memref<1x128xf32, #tpu.memory_space<vmem>>, %arg5: memref<1x128xf32, #tpu.memory_space<vmem>>, %arg6: memref<1x128xf32, #tpu.memory_space<vmem>>, %arg7: memref<8x128xf32, #tpu.memory_space<vmem>>, %arg8: memref<8x128xf32, #tpu.memory_space<vmem>>) attributes {dimension_semantics = [#tpu.dimension_semantics<parallel>, #tpu.dimension_semantics<arbitrary>], iteration_bounds = array<i64: 1, 1>, scalar_prefetch = 0 : i64, scratch_operands = 1 : i64, tpu.core_type = #tpu.core_type<tc>, window_params = [{transform_indices = @transform_0, window_bounds = array<i64: 8, 128>}, {transform_indices = @transform_1, window_bounds = array<i64: 128, 128>}, {transform_indices = @transform_2, window_bounds = array<i64: 1, 128>}, {transform_indices = @transform_3, window_bounds = array<i64: 1, 128>}, {transform_indices = @transform_4, window_bounds = array<i64: 1, 128>}, {transform_indices = @transform_5, window_bounds = array<i64: 8, 128>}]} {
    %c0 = arith.constant 0 : index
    %c0_0 = arith.constant 0 : index
    %0 = vector.load %arg2[%c0, %c0_0] : memref<8x128xf32, #tpu.memory_space<vmem>>, vector<8x128xf32>
    %c0_1 = arith.constant 0 : index
    %c0_2 = arith.constant 0 : index
    %1 = vector.load %arg3[%c0_1, %c0_2] : memref<128x128xf32, #tpu.memory_space<vmem>>, vector<128x128xf32>
    %cst = arith.constant dense<0.000000e+00> : vector<8x128xf32>
    %2 = tpu.matmul %0, %1, %cst {dimension_numbers = #tpu.dot_dimension_numbers<[1], [0], [0], [1], [0, 0, 1, 1], [], []>} : vector<8x128xf32>, vector<128x128xf32>, vector<8x128xf32> -> vector<8x128xf32>
    %c0_i32 = arith.constant 0 : i32
    %3 = arith.cmpi eq, %arg1, %c0_i32 : i32
    %4 = arith.extui %3 : i1 to i32
    %c0_i32_3 = arith.constant 0 : i32
    %5 = arith.cmpi ne, %4, %c0_i32_3 : i32
    scf.if %5 {
      %c0_8 = arith.constant 0 : index
      %c0_9 = arith.constant 0 : index
      %12 = vector.load %arg8[%c0_8, %c0_9] : memref<8x128xf32, #tpu.memory_space<vmem>>, vector<8x128xf32>
      tpu.vector_store %arg8[%c0_8, %c0_9], %2 {strides = array<i32>} : memref<8x128xf32, #tpu.memory_space<vmem>>, vector<8x128xf32>,
    } else {
    }
    %c0_i32_4 = arith.constant 0 : i32
    %6 = arith.cmpi ne, %arg1, %c0_i32_4 : i32
    %7 = arith.extui %6 : i1 to i32
    %c0_i32_5 = arith.constant 0 : i32
    %8 = arith.cmpi ne, %7, %c0_i32_5 : i32
    scf.if %8 {
      %c0_8 = arith.constant 0 : index
      %c0_9 = arith.constant 0 : index
      %12 = vector.load %arg8[%c0_8, %c0_9] : memref<8x128xf32, #tpu.memory_space<vmem>>, vector<8x128xf32>
      %13 = arith.addf %12, %2 : vector<8x128xf32>
      %c0_10 = arith.constant 0 : index
      %c0_11 = arith.constant 0 : index
      %14 = vector.load %arg8[%c0_10, %c0_11] : memref<8x128xf32, #tpu.memory_space<vmem>>, vector<8x128xf32>
      tpu.vector_store %arg8[%c0_10, %c0_11], %13 {strides = array<i32>} : memref<8x128xf32, #tpu.memory_space<vmem>>, vector<8x128xf32>,
    } else {
    }
    %c0_i32_6 = arith.constant 0 : i32
    %9 = arith.cmpi eq, %arg1, %c0_i32_6 : i32
    %10 = arith.extui %9 : i1 to i32
    %c0_i32_7 = arith.constant 0 : i32
    %11 = arith.cmpi ne, %10, %c0_i32_7 : i32
    scf.if %11 {
      %c0_8 = arith.constant 0 : index
      %c0_9 = arith.constant 0 : index
      %12 = vector.load %arg8[%c0_8, %c0_9] : memref<8x128xf32, #tpu.memory_space<vmem>>, vector<8x128xf32>
      %cst_10 = arith.constant dense<0.000000e+00> : vector<128xf32>
      %13 = vector.multi_reduction <add>, %12, %cst_10 [0] : vector<8x128xf32> to vector<128xf32>
      %14 = vector.shape_cast %13 : vector<128xf32> to vector<1x128xf32>
      %cst_11 = arith.constant 8.000000e+00 : f32
      %15 = vector.broadcast %cst_11 : f32 to vector<1x128xf32>
      %16 = arith.divf %14, %15 : vector<1x128xf32>
      %17 = vector.broadcast %16 : vector<1x128xf32> to vector<8x128xf32>
      %18 = arith.subf %12, %17 : vector<8x128xf32>
      %19 = arith.mulf %18, %18 : vector<8x128xf32>
      %cst_12 = arith.constant dense<0.000000e+00> : vector<128xf32>
      %20 = vector.multi_reduction <add>, %19, %cst_12 [0] : vector<8x128xf32> to vector<128xf32>
      %21 = vector.shape_cast %20 : vector<128xf32> to vector<1x128xf32>
      %cst_13 = arith.constant 8.000000e+00 : f32
      %22 = vector.broadcast %cst_13 : f32 to vector<1x128xf32>
      %23 = arith.divf %21, %22 : vector<1x128xf32>
      %cst_14 = arith.constant 9.99999974E-6 : f32
      %24 = vector.broadcast %cst_14 : f32 to vector<1x128xf32>
      %25 = arith.addf %23, %24 : vector<1x128xf32>
      %26 = math.rsqrt %25 : vector<1x128xf32>
      %27 = vector.broadcast %26 : vector<1x128xf32> to vector<8x128xf32>
      %28 = arith.mulf %18, %27 : vector<8x128xf32>
      %c0_15 = arith.constant 0 : index
      %c0_16 = arith.constant 0 : index
      %29 = vector.load %arg5[%c0_15, %c0_16] : memref<1x128xf32, #tpu.memory_space<vmem>>, vector<1x128xf32>
      %30 = vector.broadcast %29 : vector<1x128xf32> to vector<8x128xf32>
      %31 = arith.mulf %28, %30 : vector<8x128xf32>
      %c0_17 = arith.constant 0 : index
      %c0_18 = arith.constant 0 : index
      %32 = vector.load %arg6[%c0_17, %c0_18] : memref<1x128xf32, #tpu.memory_space<vmem>>, vector<1x128xf32>
      %33 = vector.broadcast %32 : vector<1x128xf32> to vector<8x128xf32>
      %34 = arith.addf %31, %33 : vector<8x128xf32>
      %cst_19 = arith.constant 0.000000e+00 : f32
      %35 = vector.broadcast %cst_19 : f32 to vector<8x128xf32>
      %36 = arith.cmpf oge, %34, %35 : vector<8x128xf32>
      %cst_20 = arith.constant 2.000000e-01 : f32
      %37 = vector.broadcast %cst_20 : f32 to vector<8x128xf32>
      %38 = arith.mulf %37, %34 : vector<8x128xf32>
      %39 = arith.select %36, %34, %38 : vector<8x128xi1>, vector<8x128xf32>
      %c0_21 = arith.constant 0 : index
      %c0_22 = arith.constant 0 : index
      %40 = vector.load %arg7[%c0_21, %c0_22] : memref<8x128xf32, #tpu.memory_space<vmem>>, vector<8x128xf32>
      tpu.vector_store %arg7[%c0_21, %c0_22], %39 {strides = array<i32>} : memref<8x128xf32, #tpu.memory_space<vmem>>, vector<8x128xf32>,
    } else {
    }
    return
  }
  func.func @transform_0(%arg0: i32, %arg1: i32) -> (i32, i32) {
    %c0_i32 = arith.constant 0 : i32
    %c0_i32_0 = arith.constant 0 : i32
    return %c0_i32, %arg1 : i32, i32
  }
  func.func @transform_1(%arg0: i32, %arg1: i32) -> (i32, i32) {
    %c0_i32 = arith.constant 0 : i32
    return %arg1, %arg0 : i32, i32
  }
  func.func @transform_2(%arg0: i32, %arg1: i32) -> (i32, i32) {
    %c0_i32 = arith.constant 0 : i32
    %c0_i32_0 = arith.constant 0 : i32
    return %c0_i32, %arg0 : i32, i32
  }
  func.func @transform_3(%arg0: i32, %arg1: i32) -> (i32, i32) {
    %c0_i32 = arith.constant 0 : i32
    %c0_i32_0 = arith.constant 0 : i32
    return %c0_i32, %arg0 : i32, i32
  }
  func.func @transform_4(%arg0: i32, %arg1: i32) -> (i32, i32) {
    %c0_i32 = arith.constant 0 : i32
    %c0_i32_0 = arith.constant 0 : i32
    return %c0_i32, %arg0 : i32, i32
  }
  func.func @transform_5(%arg0: i32, %arg1: i32) -> (i32, i32) {
    %c0_i32 = arith.constant 0 : i32
    %c0_i32_0 = arith.constant 0 : i32
    return %c0_i32, %arg0 : i32, i32
  }
}

</mosaic_0001>

<llo_original>
// kernel: tpu_custom_call.1
$region0: #{tpu_custom_call.1}
  #allocation0 [shape = 'u32[]', space=smem, size = 0x4, offset = 0x4, fixed_abs, tag = 'smem constant byte address 0x4 - core index']
  #allocation1 [shape = 'u32[144,128]{1,0:T(1,128)}', space=vmem, size = 0x12000, scoped, tag = 'internal scratch']
  #allocation2 [shape = 'f32[8,128]{1,0:T(8,128)}', space=vmem, size = 0x1000, scoped, tag = 'scratch operand']
  %s0 = inlined_call_operand.hbm [shape: f32[8,128], index: 0, kind: input, shape index: {}]
  %s1 = inlined_call_operand.hbm [shape: f32[128,128], index: 1, kind: input, shape index: {}]
  %s2 = inlined_call_operand.vmem [shape: f32[1,128], index: 2, kind: input, shape index: {}]
  %s3 = inlined_call_operand.vmem [shape: f32[1,128], index: 3, kind: input, shape index: {}]
  %s4 = inlined_call_operand.vmem [shape: f32[1,128], index: 4, kind: input, shape index: {}]
  %s5 = inlined_call_operand.hbm [shape: f32[8,128], index: 5, kind: output, shape index: {}]
  %s6 = sld [smem:[#allocation0]]
  $region50: #{tpu_custom_call.1} parent=0
    _
  %s8 = ssub.s32 1, %s6
  %s9 = scalar_select 0, %s8, %s6
  $region1: #{tpu_custom_call.1} parent=0
    #allocation3 [shape = 'u8[4096]{0}', space=vmem, size = 0x1000, scoped, tag = 'input window, operand 0, single buffered']
    #allocation4 [shape = 's32[1]{0}', space=sflag, size = 0x4, scoped, tag = 'scoped memory for tpu_custom_call.1']
    #allocation5 [shape = 's32[1]{0}', space=sflag, size = 0x4, scoped, tag = 'scoped memory for tpu_custom_call.1']
    #allocation6 [shape = 'u8[65536]{0}', space=vmem, size = 0x10000, scoped, tag = 'input window, operand 1, single buffered']
    #allocation7 [shape = 's32[1]{0}', space=sflag, size = 0x4, scoped, tag = 'scoped memory for tpu_custom_call.1']
    #allocation8 [shape = 'u8[4096]{0}', space=vmem, size = 0x1000, scoped, tag = 'output window, operand 0, single buffered']
    %10 = vsyncpa [#allocation4], 0
    %11 = vsyncpa [#allocation7], 0
    %12 = vsyncpa [#allocation5], 0
    // Predicated region
    $region2: #{tpu_custom_call.1} parent=1 // pred_check
      _
    $region3: #{tpu_custom_call.1} parent=1 // pred_check_branch
      %14 = sbr.rel (0) target = $region5
    $region4: #{tpu_custom_call.1} parent=1 // pred_region
      %s16 = ssub.s32 128, 128
      %17 = vsyncadd [#allocation4], %s16
      %s19 = sshll.u32 [#allocation3], 4
      %s20 = int_to_ptr.vmem [resolvable:$true] %s19
      %22 = dma.hbm_to_vmem [thread:$0]  %s0, 128, %s20, [#allocation4]
    $region5: #{tpu_custom_call.1} parent=1 // pred_fallthru
      _
    // Predicated region
    $region6: #{tpu_custom_call.1} parent=1 // pred_check
      _
    $region7: #{tpu_custom_call.1} parent=1 // pred_check_branch
      %24 = sbr.rel (0) target = $region9
    $region8: #{tpu_custom_call.1} parent=1 // pred_region
      %s26 = ssub.s32 2048, 2048
      %27 = vsyncadd [#allocation7], %s26
      %s28 = sshll.u32 [#allocation6], 4
      %s29 = int_to_ptr.vmem [resolvable:$true] %s28
      %34 = dma.hbm_to_vmem [thread:$0]  %s1, 2048, %s29, [#allocation7], 128, 128, 8
    $region9: #{tpu_custom_call.1} parent=1 // pred_fallthru
      _
    // Predicated region
    $region10: #{tpu_custom_call.1} parent=1 // pred_check
      _
    $region11: #{tpu_custom_call.1} parent=1 // pred_check_branch
      %36 = sbr.rel (0) target = $region13
    $region12: #{tpu_custom_call.1} parent=1 // pred_region
      _
    $region13: #{tpu_custom_call.1} parent=1 // pred_fallthru
      _
    // Predicated region
    $region14: #{tpu_custom_call.1} parent=1 // pred_check
      _
    $region15: #{tpu_custom_call.1} parent=1 // pred_check_branch
      %38 = sbr.rel (0) target = $region17
    $region16: #{tpu_custom_call.1} parent=1 // pred_region
      _
    $region17: #{tpu_custom_call.1} parent=1 // pred_fallthru
      _
    // Predicated region
    $region18: #{tpu_custom_call.1} parent=1 // pred_check
      _
    $region19: #{tpu_custom_call.1} parent=1 // pred_check_branch
      %40 = sbr.rel (0) target = $region21
    $region20: #{tpu_custom_call.1} parent=1 // pred_region
      _
    $region21: #{tpu_custom_call.1} parent=1 // pred_fallthru
      _
    // Predicated region
    $region22: #{tpu_custom_call.1} parent=1 // pred_check
      _
    $region23: #{tpu_custom_call.1} parent=1 // pred_check_branch
      %42 = sbr.rel (0) target = $region25
    $region24: #{tpu_custom_call.1} parent=1 // pred_region
      %43 = dma.done [#allocation4], 128
    $region25: #{tpu_custom_call.1} parent=1 // pred_fallthru
      _
    // Predicated region
    $region26: #{tpu_custom_call.1} parent=1 // pred_check
      _
    $region27: #{tpu_custom_call.1} parent=1 // pred_check_branch
      %45 = sbr.rel (0) target = $region29
    $region28: #{tpu_custom_call.1} parent=1 // pred_region
      %46 = dma.done [#allocation7], 2048
    $region29: #{tpu_custom_call.1} parent=1 // pred_fallthru
      _
    %v47 = vld [vmem:[#allocation3] sm:$0xff]
    %v48 = vld [vmem:[#allocation6] sm:$0xff]
    %v49 = vld [vmem:[#allocation6 + $0x8] sm:$0xff]
    %v50 = vld [vmem:[#allocation6 + $0x10] sm:$0xff]
    %v51 = vld [vmem:[#allocation6 + $0x18] sm:$0xff]
    %v52 = vld [vmem:[#allocation6 + $0x20] sm:$0xff]
    %v53 = vld [vmem:[#allocation6 + $0x28] sm:$0xff]
    %v54 = vld [vmem:[#allocation6 + $0x30] sm:$0xff]
    %v55 = vld [vmem:[#allocation6 + $0x38] sm:$0xff]
    %v56 = vld [vmem:[#allocation6 + $0x40] sm:$0xff]
    %v57 = vld [vmem:[#allocation6 + $0x48] sm:$0xff]
    %v58 = vld [vmem:[#allocation6 + $0x50] sm:$0xff]
    %v59 = vld [vmem:[#allocation6 + $0x58] sm:$0xff]
    %v60 = vld [vmem:[#allocation6 + $0x60] sm:$0xff]
    %v61 = vld [vmem:[#allocation6 + $0x68] sm:$0xff]
    %v62 = vld [vmem:[#allocation6 + $0x70] sm:$0xff]
    %v63 = vld [vmem:[#allocation6 + $0x78] sm:$0xff]
    %64 = vmatprep.subr.mxu0 0.0
    %65 = vmatpush1.msra.mxu0 %v63
    %66 = vmatprep.subr.mxu0 0.0
    %67 = vmatpush1.msra.mxu0 %v62
    %68 = vmatprep.subr.mxu0 0.0
    %69 = vmatpush1.msra.mxu0 %v61
    %70 = vmatprep.subr.mxu0 0.0
    %71 = vmatpush1.msra.mxu0 %v60
    %72 = vmatprep.subr.mxu0 0.0
    %73 = vmatpush1.msra.mxu0 %v59
    %74 = vmatprep.subr.mxu0 0.0
    %75 = vmatpush1.msra.mxu0 %v58
    %76 = vmatprep.subr.mxu0 0.0
    %77 = vmatpush1.msra.mxu0 %v57
    %78 = vmatprep.subr.mxu0 0.0
    %79 = vmatpush1.msra.mxu0 %v56
    %80 = vmatprep.subr.mxu0 0.0
    %81 = vmatpush1.msra.mxu0 %v55
    %82 = vmatprep.subr.mxu0 0.0
    %83 = vmatpush1.msra.mxu0 %v54
    %84 = vmatprep.subr.mxu0 0.0
    %85 = vmatpush1.msra.mxu0 %v53
    %86 = vmatprep.subr.mxu0 0.0
    %87 = vmatpush1.msra.mxu0 %v52
    %88 = vmatprep.subr.mxu0 0.0
    %89 = vmatpush1.msra.mxu0 %v51
    %90 = vmatprep.subr.mxu0 0.0
    %91 = vmatpush1.msra.mxu0 %v50
    %92 = vmatprep.subr.mxu0 0.0
    %93 = vmatpush1.msra.mxu0 %v49
    %94 = vmatprep.subr.mxu0 0.0
    %95 = vmatpush1.msra.mxu0 %v48
    %96 = vmatprep.subr.mxu0 0.0
    %97 = vmatpush2.msra.mxu0 0.0
    %98 = vmatprep.subr.mxu0 0.0
    %99 = vmatpush2.msra.mxu0 0.0
    %100 = vmatprep.subr.mxu0 0.0
    %101 = vmatpush2.msra.mxu0 0.0
    %102 = vmatprep.subr.mxu0 0.0
    %103 = vmatpush2.msra.mxu0 0.0
    %104 = vmatprep.subr.mxu0 0.0
    %105 = vmatpush2.msra.mxu0 0.0
    %106 = vmatprep.subr.mxu0 0.0
    %107 = vmatpush2.msra.mxu0 0.0
    %108 = vmatprep.subr.mxu0 0.0
    %109 = vmatpush2.msra.mxu0 0.0
    %110 = vmatprep.subr.mxu0 0.0
    %111 = vmatpush2.msra.mxu0 0.0
    %112 = vmatprep.subr.mxu0 0.0
    %113 = vmatpush2.msra.mxu0 0.0
    %114 = vmatprep.subr.mxu0 0.0
    %115 = vmatpush2.msra.mxu0 0.0
    %116 = vmatprep.subr.mxu0 0.0
    %117 = vmatpush2.msra.mxu0 0.0
    %118 = vmatprep.subr.mxu0 0.0
    %119 = vmatpush2.msra.mxu0 0.0
    %120 = vmatprep.subr.mxu0 0.0
    %121 = vmatpush2.msra.mxu0 0.0
    %122 = vmatprep.subr.mxu0 0.0
    %123 = vmatpush2.msra.mxu0 0.0
    %124 = vmatprep.subr.mxu0 0.0
    %125 = vmatpush2.msra.mxu0 0.0
    %126 = vmatprep.subr.mxu0 0.0
    %127 = vmatpush2.msra.mxu0 0.0
    %128 = vmatprep.mubr.f32.mxu0 0.0
    %129 = vmatmul.mubr.f32.gmra.mxu0 %v47
    %v130 = vpop.f32.mrf.mxu0
    %v131 = vadd.f32 0.0, %v130
    %v132 = vpop.f32.mrf.mxu0
    %133 = vdwg.mxu0
    %p134 = scmp.eq.s32.totalorder 0, 0
    // Predicated region
    $region30: #{tpu_custom_call.1} parent=1 // pred_check
      %p135 = pneg %p134
    $region31: #{tpu_custom_call.1} parent=1 // pred_check_branch
      %137 = sbr.rel (%p135) target = $region33
    $region32: #{tpu_custom_call.1} parent=1 // pred_region
      %138 = vst [vmem:[#allocation2] sm:$0xff] %v131
    $region33: #{tpu_custom_call.1} parent=1 // pred_fallthru
      _
    %p139 = scmp.ne.s32.totalorder 0, 0
    // Predicated region
    $region34: #{tpu_custom_call.1} parent=1 // pred_check
      %p140 = pneg %p139
    $region35: #{tpu_custom_call.1} parent=1 // pred_check_branch
      %142 = sbr.rel (%p140) target = $region37
    $region36: #{tpu_custom_call.1} parent=1 // pred_region
      %v143 = vld [vmem:[#allocation2] sm:$0xff]
      %v144 = vadd.f32 %v143, %v131
      %145 = vst [vmem:[#allocation2] sm:$0xff] %v144
    $region37: #{tpu_custom_call.1} parent=1 // pred_fallthru
      _
    // Predicated region
    $region38: #{tpu_custom_call.1} parent=1 // pred_check
      %p146 = pneg %p134
    $region39: #{tpu_custom_call.1} parent=1 // pred_check_branch
      %148 = sbr.rel (%p146) target = $region41
    $region40: #{tpu_custom_call.1} parent=1 // pred_region
      %v149 = vld [vmem:[#allocation2] sm:$0xff]
      %v150 = vrot.slane %v149, 4
      %v151 = vadd.f32 %v149, %v150
      %v152 = vrot.slane %v151, 2
      %v153 = vadd.f32 %v151, %v152
      %v154 = vrot.slane %v153, 1
      %v155 = vadd.f32 %v153, %v154
      %v156 = vrcp.pop 8.0
      %v157 = vmul.f32 %v155, %v156
      %v158 = vsub.f32 %v149, %v157
      %v159 = vmul.f32 %v158, %v158
      %v160 = vrot.slane %v159, 4
      %v161 = vadd.f32 %v159, %v160
      %v162 = vrot.slane %v161, 2
      %v163 = vadd.f32 %v161, %v162
      %v164 = vrot.slane %v163, 1
      %v165 = vadd.f32 %v163, %v164
      %v166 = vmul.f32 %v165, %v156
      %v167 = vadd.f32 %v166, 1e-05
      %v168 = vrsqrt.pop %v167
      %v169 = vmul.f32 %v158, %v168
      %v170 = vld [vmem:[%s3] sm:$0x1]
      %v172 = vlaneseq
      %v173 = vshrl.u32 %v172, 7
      %v174 = vsub.s32 0, %v173
      %v175 = vrot.slane %v170, %v174
      %v177 = vmul.f32 %v169, %v175
      %v178 = vld [vmem:[%s4] sm:$0x1]
      %v180 = vlaneseq
      %v181 = vshrl.u32 %v180, 7
      %v182 = vsub.s32 0, %v181
      %v183 = vrot.slane %v178, %v182
      %v185 = vadd.f32 %v177, %v183
      %vm186 = vcmp.ge.f32.partialorder %v185, 0.0
      %v187 = vmul.f32 %v185, 0.2
      %v188 = vsel %vm186, %v185, %v187
      %189 = vst [vmem:[#allocation8] sm:$0xff] %v188
    $region41: #{tpu_custom_call.1} parent=1 // pred_fallthru
      _
    // Predicated region
    $region42: #{tpu_custom_call.1} parent=1 // pred_check
      _
    $region43: #{tpu_custom_call.1} parent=1 // pred_check_branch
      %191 = sbr.rel (0) target = $region45
    $region44: #{tpu_custom_call.1} parent=1 // pred_region
      %s193 = ssub.s32 128, 128
      %194 = vsyncadd [#allocation5], %s193
      %s196 = sshll.u32 [#allocation8], 4
      %s197 = int_to_ptr.vmem [resolvable:$true] %s196
      %199 = dma.vmem_to_hbm [thread:$0]  %s197, 128, %s5, [#allocation5]
    $region45: #{tpu_custom_call.1} parent=1 // pred_fallthru
      _
    // Predicated region
    $region46: #{tpu_custom_call.1} parent=1 // pred_check
      _
    $region47: #{tpu_custom_call.1} parent=1 // pred_check_branch
      %201 = sbr.rel (0) target = $region49
    $region48: #{tpu_custom_call.1} parent=1 // pred_region
      %202 = dma.done [#allocation5], 128
    $region49: #{tpu_custom_call.1} parent=1 // pred_fallthru
      _
    %203 = vsyncpa [#allocation4], 1
    %204 = vsyncpa [#allocation7], 1
    %205 = vsyncpa [#allocation5], 1

</llo_original>
